<compile_context>
chip_gen: v7x
topology: tpu7x:2x2x1
jax: 0.10.0
libtpu: 0.0.40
codegen_flags: <defaults>
</compile_context>

<pallas_src>
import jax
import jax.numpy as jnp
from jax.experimental import pallas as pl
from jax.experimental.pallas import tpu as pltpu

_LANES = 128
_BLOCK_BYTES = 8 * 1024 * 1024        # ~8 MiB blocks (v7x per-step overhead ~6%)
_VMEM_LIMIT_BYTES = 48 * 1024 * 1024  # 2x dbl-buffered 8 MiB (in+out) = 32 MiB < 48 MiB


def _ramp_kernel(x_ref, o_ref):
    x = x_ref[...]
    # hardtanh(x, -0.5, 0.5) == clip(x, -0.5, 0.5); weak-typed consts keep dtype.
    clamped = jnp.minimum(jnp.maximum(x, -0.5), 0.5)
    o_ref[...] = 0.5 * (clamped + 1.0)


def _sublane_pack(dtype) -> int:
    """Native sublane packing for the dtype: 8 (32-bit), 16 (16-bit), 32 (8-bit)."""
    bits = jnp.dtype(dtype).itemsize * 8
    if bits >= 32:
        return 8
    if bits == 16:
        return 16
    return 32


def _ramp_ref(x: jax.Array) -> jax.Array:
    """Plain-JAX ramp (used only for tiny <128-element tails / inputs)."""
    return 0.5 * (jnp.clip(x, -0.5, 0.5) + 1.0)


def _run_slab(slab: jax.Array, tr: int) -> jax.Array:
    rows, lanes = slab.shape
    grid = (pl.cdiv(rows, tr),)  # last block may be partial: reads padded, writes masked
    return pl.pallas_call(
        _ramp_kernel,
        out_shape=jax.ShapeDtypeStruct((rows, lanes), slab.dtype),
        grid_spec=pltpu.PrefetchScalarGridSpec(
            num_scalar_prefetch=0,
            grid=grid,
            in_specs=[pl.BlockSpec((tr, lanes), lambda i: (i, 0))],
            out_specs=pl.BlockSpec((tr, lanes), lambda i: (i, 0)),
        ),
        compiler_params=pltpu.CompilerParams(
            dimension_semantics=("parallel",),
            vmem_limit_bytes=_VMEM_LIMIT_BYTES,
        ),
    )(slab)


def myact_ramp(x: jax.Array, *, target_block_bytes: int = _BLOCK_BYTES) -> jax.Array:
    """Elementwise ramp activation, matching myact_Ramp.forward semantics."""
    orig_shape = x.shape
    dtype = x.dtype
    if not jnp.issubdtype(dtype, jnp.floating):
        raise TypeError(f"myact_ramp expects a floating dtype, got {dtype}")

    n = x.size
    if n == 0:
        return x

    flat = x.reshape(-1)
    n_bulk = (n // _LANES) * _LANES

    if n_bulk == 0:
        # Fewer than 128 elements total: kernel launch overhead is not worth it.
        return _ramp_ref(flat).reshape(orig_shape)

    sub = _sublane_pack(dtype)
    itemsize = jnp.dtype(dtype).itemsize
    # Rows per block targeting ~target_block_bytes, rounded to the sublane pack.
    tr_target = max(sub, (target_block_bytes // (_LANES * itemsize)) // sub * sub)

    rows = n_bulk // _LANES
    if rows <= tr_target:
        # Single block covering the whole slab (block shape == array dims: always legal).
        tr = rows
    else:
        # Ensure >= ~4 grid steps for mid-sized inputs so both v7x TensorCores get
        # work; cap at tr_target for large inputs.  tr is a multiple of `sub` (>= 8),
        # satisfying the (8,128) block-shape rule; last block may be partial.
        tr = min(tr_target, pl.cdiv(rows, 4 * sub) * sub)
        tr = max(tr, sub)

    bulk = flat if n_bulk == n else flat[:n_bulk]
    slab = bulk.reshape(rows, _LANES)  # zero-copy lane-dense slab
    out_bulk = _run_slab(slab, tr).reshape(-1)

    if n_bulk == n:
        return out_bulk.reshape(orig_shape)

    # Awkward tail (< 128 elements): compute in plain JAX and stitch back — avoids
    # the full-array jnp.pad + output slice (2 extra HBM passes) of a padded path.
    tail_out = _ramp_ref(flat[n_bulk:])
    return jnp.concatenate([out_bulk, tail_out]).reshape(orig_shape)


if __name__ == "__main__":
    key = jax.random.PRNGKey(0)

    # NCHW, small shapes: batch=2, channels=4, spatial=16x16
    x = jax.random.normal(key, (2, 4, 16, 16), dtype=jnp.float32)
    y = jax.block_until_ready(myact_ramp(x))

    ref = 0.5 * (jnp.clip(x, -0.5, 0.5) + 1.0)
    assert y.shape == x.shape
    assert y.dtype == x.dtype
    assert jnp.allclose(y, ref, atol=1e-6), "mismatch vs reference (small f32)"

    # Multi-block path (rows > tr_target -> >= 4 grid steps, parallel axis).
    xl = jax.random.normal(key, (16, 64, 64, 64), dtype=jnp.float32)  # 4M elems (16 MiB)
    yl = jax.block_until_ready(myact_ramp(xl))
    assert jnp.allclose(yl, 0.5 * (jnp.clip(xl, -0.5, 0.5) + 1.0), atol=1e-6)

    # bf16 path (native 16-sublane packing).
    xb = xl.astype(jnp.bfloat16)
    yb = jax.block_until_ready(myact_ramp(xb))
    assert yb.dtype == jnp.bfloat16
    assert jnp.allclose(
        yb.astype(jnp.float32),
        0.5 * (jnp.clip(xb.astype(jnp.float32), -0.5, 0.5) + 1.0),
        atol=1e-2,
    )

    # Awkward size (n % 128 != 0): bulk via kernel, tail via plain JAX stitch.
    xa = jax.random.normal(key, (3, 5, 7, 11), dtype=jnp.float32)  # 1155 elements
    ya = jax.block_until_ready(myact_ramp(xa))
    assert ya.shape == xa.shape
    assert jnp.allclose(ya, 0.5 * (jnp.clip(xa, -0.5, 0.5) + 1.0), atol=1e-6)

    print("KERNEL_OK")
</pallas_src>

<mosaic_0001>
module attributes {stable_mosaic.version = 11 : i64} {
  func.func @_ramp_kernel(%arg0: i32, %arg1: memref<16x128xf32, #tpu.memory_space<vmem>>, %arg2: memref<16x128xf32, #tpu.memory_space<vmem>>) attributes {dimension_semantics = [#tpu.dimension_semantics<parallel>], iteration_bounds = array<i64: 1>, scalar_prefetch = 0 : i64, scratch_operands = 0 : i64, tpu.core_type = #tpu.core_type<tc>, window_params = [{transform_indices = @transform_0, window_bounds = array<i64: 16, 128>}, {transform_indices = @transform_1, window_bounds = array<i64: 16, 128>}]} {
    %c0 = arith.constant 0 : index
    %c0_0 = arith.constant 0 : index
    %0 = vector.load %arg1[%c0, %c0_0] : memref<16x128xf32, #tpu.memory_space<vmem>>, vector<16x128xf32>
    %cst = arith.constant -5.000000e-01 : f32
    %1 = vector.broadcast %cst : f32 to vector<16x128xf32>
    %2 = arith.maximumf %0, %1 : vector<16x128xf32>
    %cst_1 = arith.constant 5.000000e-01 : f32
    %3 = vector.broadcast %cst_1 : f32 to vector<16x128xf32>
    %4 = arith.minimumf %2, %3 : vector<16x128xf32>
    %cst_2 = arith.constant 1.000000e+00 : f32
    %5 = vector.broadcast %cst_2 : f32 to vector<16x128xf32>
    %6 = arith.addf %4, %5 : vector<16x128xf32>
    %cst_3 = arith.constant 5.000000e-01 : f32
    %7 = vector.broadcast %cst_3 : f32 to vector<16x128xf32>
    %8 = arith.mulf %7, %6 : vector<16x128xf32>
    %c0_4 = arith.constant 0 : index
    %c0_5 = arith.constant 0 : index
    %9 = vector.load %arg2[%c0_4, %c0_5] : memref<16x128xf32, #tpu.memory_space<vmem>>, vector<16x128xf32>
    tpu.vector_store %arg2[%c0_4, %c0_5], %8 {strides = array<i32>} : memref<16x128xf32, #tpu.memory_space<vmem>>, vector<16x128xf32>,
    return
  }
  func.func @transform_0(%arg0: i32) -> (i32, i32) {
    %c0_i32 = arith.constant 0 : i32
    %c0_i32_0 = arith.constant 0 : i32
    return %arg0, %c0_i32 : i32, i32
  }
  func.func @transform_1(%arg0: i32) -> (i32, i32) {
    %c0_i32 = arith.constant 0 : i32
    %c0_i32_0 = arith.constant 0 : i32
    return %arg0, %c0_i32 : i32, i32
  }
}

</mosaic_0001>

<llo_original>
// kernel: tpu_custom_call.1
$region0: #{tpu_custom_call.1}
  #allocation0 [shape = 'u32[]', space=smem, size = 0x4, offset = 0x4, fixed_abs, tag = 'smem constant byte address 0x4 - core index']
  #allocation1 [shape = 'u32[144,128]{1,0:T(1,128)}', space=vmem, size = 0x12000, scoped, tag = 'internal scratch']
  %s0 = inlined_call_operand.hbm [shape: f32[16,128], index: 0, kind: input, shape index: {}]
  %s1 = inlined_call_operand.hbm [shape: f32[16,128], index: 1, kind: output, shape index: {}]
  %s2 = sld [smem:[#allocation0]]
  $region18: #{tpu_custom_call.1} parent=0
    _
  %s4 = ssub.s32 1, %s2
  %s5 = scalar_select 0, %s4, %s2
  $region1: #{tpu_custom_call.1} parent=0
    #allocation2 [shape = 'u8[8192]{0}', space=vmem, size = 0x2000, scoped, tag = 'input window, operand 0, single buffered']
    #allocation3 [shape = 's32[1]{0}', space=sflag, size = 0x4, scoped, tag = 'scoped memory for tpu_custom_call.1']
    #allocation4 [shape = 's32[1]{0}', space=sflag, size = 0x4, scoped, tag = 'scoped memory for tpu_custom_call.1']
    #allocation5 [shape = 'u8[8192]{0}', space=vmem, size = 0x2000, scoped, tag = 'output window, operand 0, single buffered']
    %6 = vsyncpa [#allocation3], 0
    %7 = vsyncpa [#allocation4], 0
    // Predicated region
    $region2: #{tpu_custom_call.1} parent=1 // pred_check
      _
    $region3: #{tpu_custom_call.1} parent=1 // pred_check_branch
      %9 = sbr.rel (0) target = $region5
    $region4: #{tpu_custom_call.1} parent=1 // pred_region
      %s11 = ssub.s32 256, 256
      %12 = vsyncadd [#allocation3], %s11
      %s13 = sshll.u32 [#allocation2], 4
      %s14 = int_to_ptr.vmem [resolvable:$true] %s13
      %19 = dma.hbm_to_vmem [thread:$0]  %s0, 256, %s14, [#allocation3], 128, 128, 8
    $region5: #{tpu_custom_call.1} parent=1 // pred_fallthru
      _
    // Predicated region
    $region6: #{tpu_custom_call.1} parent=1 // pred_check
      _
    $region7: #{tpu_custom_call.1} parent=1 // pred_check_branch
      %21 = sbr.rel (0) target = $region9
    $region8: #{tpu_custom_call.1} parent=1 // pred_region
      %22 = dma.done [#allocation3], 256
    $region9: #{tpu_custom_call.1} parent=1 // pred_fallthru
      _
    %v23 = vld [vmem:[#allocation2] sm:$0xff]
    %v24 = vld [vmem:[#allocation2 + $0x8] sm:$0xff]
    %v25 = vmax.f32 %v23, -0.5
    %v26 = vmax.f32 %v24, -0.5
    %v27 = vmin.f32 %v25, 0.5
    %v28 = vmin.f32 %v26, 0.5
    %v29 = vadd.f32 %v27, 1.0
    %v30 = vadd.f32 %v28, 1.0
    %v31 = vmul.f32 %v29, 0.5
    %v32 = vmul.f32 %v30, 0.5
    %33 = vst [vmem:[#allocation5] sm:$0xff] %v31
    %34 = vst [vmem:[#allocation5 + $0x8] sm:$0xff] %v32
    // Predicated region
    $region10: #{tpu_custom_call.1} parent=1 // pred_check
      _
    $region11: #{tpu_custom_call.1} parent=1 // pred_check_branch
      %36 = sbr.rel (0) target = $region13
    $region12: #{tpu_custom_call.1} parent=1 // pred_region
      %s38 = ssub.s32 256, 256
      %39 = vsyncadd [#allocation4], %s38
      %s40 = sshll.u32 [#allocation5], 4
      %s41 = int_to_ptr.vmem [resolvable:$true] %s40
      %46 = dma.vmem_to_hbm [thread:$0]  %s41, 256, %s1, [#allocation4], 128, 128, 8
    $region13: #{tpu_custom_call.1} parent=1 // pred_fallthru
      _
    // Predicated region
    $region14: #{tpu_custom_call.1} parent=1 // pred_check
      _
    $region15: #{tpu_custom_call.1} parent=1 // pred_check_branch
      %48 = sbr.rel (0) target = $region17
    $region16: #{tpu_custom_call.1} parent=1 // pred_region
      %49 = dma.done [#allocation4], 256
    $region17: #{tpu_custom_call.1} parent=1 // pred_fallthru
      _
    %50 = vsyncpa [#allocation3], 1
    %51 = vsyncpa [#allocation4], 1

</llo_original>
